<compile_context>
chip_gen: v6e
topology: v6e:2x2x1
jax: 0.10.0
libtpu: 0.0.40
codegen_flags: <defaults>
</compile_context>

<pallas_src>
import math

import jax
import jax.numpy as jnp
from jax import lax
from jax.experimental import pallas as pl
from jax.experimental.pallas import tpu as pltpu

GEM_EPS = 1e-6


def _round_up(n, m):
    return ((n + m - 1) // m) * m


def _int_pow(x, n):
    """x**n for a static positive integer n using only VPU multiplies."""
    assert n >= 1
    result = None
    base = x
    while True:
        if n & 1:
            result = base if result is None else result * base
        n >>= 1
        if n == 0:
            break
        base = base * base
    return result


def _static_int_exponent(p_arr):
    """Return int(p) if p is concrete and integer-valued, else None (general path)."""
    try:
        pv = float(jax.device_get(p_arr).reshape(-1)[0])
    except Exception:            # traced under jit -> cannot specialize here
        return None
    if pv == round(pv) and 1.0 <= pv <= 16.0:
        return int(round(pv))
    return None


def _vmem_capacity_bytes():
    try:
        return int(pltpu.get_tpu_info().vmem_capacity_bytes)
    except Exception:
        return 64 * 1024 * 1024          # conservative (v7x per-core VMEM)


def _choose_tiles(N, C, HW, x_itemsize, weight_bytes):
    """Generation-aware batch/spatial tiling + vmem limit."""
    vmem_cap = _vmem_capacity_bytes()
    # ~48 MiB on v7x (64 MiB physical), ~96 MiB on v5e/v6e (128 MiB physical).
    vmem_limit = max(32 * 1024 * 1024, min(vmem_cap * 3 // 4, 100 * 1024 * 1024))

    # Per-element residency: 2 pipeline copies of the x tile in its streaming dtype
    # plus ~3 f32-sized elementwise temporaries (clamp / pow) Mosaic materializes.
    per_elem = 2 * x_itemsize + 3 * 4
    reserve = 4 * 1024 * 1024            # out double-buffer, accumulator, misc
    # Weights use constant index maps (VMEM-resident); budget 2 copies conservatively
    # rather than relying on single-buffering of constant-index inputs.
    avail = vmem_limit - 2 * weight_bytes - reserve
    if avail < 2 * 1024 * 1024:
        avail = 2 * 1024 * 1024
    max_elems = avail // per_elem

    row_elems = C * HW
    if min(N, 8) * row_elems <= max_elems:
        # Whole spatial extent per block; tile over batch only.
        tile_hw, n_hw = HW, 1
        tile_n = min(N, max(1, max_elems // row_elems))
        if tile_n < N:
            tile_n = max(8, (tile_n // 8) * 8)
    else:
        # Large H*W*C: also tile the spatial axis (accumulated in the kernel).
        tile_n = N if N < 8 else 8
        tile_hw = max(128, (max_elems // max(1, tile_n * C)) // 128 * 128)
        tile_hw = min(tile_hw, _round_up(HW, 128))
        n_hw = pl.cdiv(HW, tile_hw)
        if n_hw == 1:
            tile_hw = HW                 # block == full dim -> no lane padding issues

    # v7x megacore: guarantee >= 2 batch grid steps when the batch allows it.
    if pl.cdiv(N, tile_n) < 2 and N >= 16:
        tile_n = _round_up(pl.cdiv(N, 2), 8)

    return tile_n, tile_hw, n_hw, vmem_limit


def _make_cls_head_kernel(hw, tile_hw, n_hw, p_int):
    """Build the kernel body; `p_int` is a static integer GeM exponent or None."""
    log_hw = math.log(float(hw))
    need_mask = (n_hw > 1) and (hw % tile_hw != 0)   # mask padded tail of last HW tile

    def kernel(p_ref, x_ref, w1_ref, b1_ref, w2_ref, b2_ref, w3_ref, b3_ref,
               o_ref, acc_ref):
        # p_ref : SMEM (1,)                learnable GeM exponent
        # x_ref : VMEM (TN, C, THW)        batch/spatial tile, native NCHW layout
        # w1_ref: VMEM (C, C//r)    b1_ref: (1, C//r)
        # w2_ref: VMEM (C//r, C)    b2_ref: (1, C)
        # w3_ref: VMEM (C, OUT_PAD) b3_ref: (1, OUT_PAD)
        # o_ref : VMEM (TN, OUT_PAD)
        # acc_ref: VMEM (TN, C) f32 scratch -- partial pow-sums over the HW grid axis
        k = pl.program_id(1)

        @pl.when(k == 0)
        def _():
            acc_ref[...] = jnp.zeros_like(acc_ref)

        # ---- GeM pooling: clamp -> pow(p) -> spatial partial sum ----
        # Upcast right after load so bf16-streamed x stays correct on v5e (no bf16 VPU).
        xc = jnp.maximum(x_ref[...].astype(jnp.float32), GEM_EPS)   # (TN, C, THW) > 0
        if p_int is not None:
            xp = _int_pow(xc, p_int)                  # VPU fast path (e.g. p = 3)
        else:
            xp = jnp.exp(p_ref[0] * jnp.log(xc))      # general pow via EUP
        if need_mask:
            col = lax.broadcasted_iota(jnp.int32, (1, 1, tile_hw), 2)
            xp = jnp.where(k * tile_hw + col < hw, xp, 0.0)
        acc_ref[...] += jnp.sum(xp, axis=-1)          # (TN, C), lane/XLU reduce

        @pl.when(k == pl.num_programs(1) - 1)
        def _():
            p = p_ref[0]
            inv_p = 1.0 / p
            # (sum/HW)^(1/p) == exp(inv_p*(log(sum) - log(HW)));  sum >= HW*eps^p > 0
            pooled = jnp.exp(inv_p * (jnp.log(acc_ref[...]) - log_hw))   # (TN, C)

            # ---- SEBlock on the flattened (TN, C) features ----
            h = jnp.dot(pooled, w1_ref[...],
                        preferred_element_type=jnp.float32) + b1_ref[...]
            h = jnp.maximum(h, 0.0)                   # ReLU
            s = jnp.dot(h, w2_ref[...],
                        preferred_element_type=jnp.float32) + b2_ref[...]
            s = jax.nn.sigmoid(s)
            se = pooled * s                           # (TN, C)

            # ---- Dropout: identity at inference (nn.Dropout in eval mode) ----
            # TODO(synk): training-mode dropout would need pltpu.prng_seed/prng_random_bits.
            # ---- Final Linear(C, OUT), lane-padded to OUT_PAD ----
            out = jnp.dot(se, w3_ref[...],
                          preferred_element_type=jnp.float32) + b3_ref[...]
            o_ref[...] = out.astype(o_ref.dtype)

    return kernel


def cls_head_forward(x_nchw, params, *, p_int=None):
    """x_nchw: (N, C, H, W) float32 or bfloat16; params: dict of kernel inputs.

    `p_int`: optional static integer GeM exponent (must match params["p"], e.g. 3 at
    inference with the PyTorch init). Passing it keeps the VPU pow fast path reachable
    under jit; otherwise it is inferred eagerly when possible.
    """
    N, C, H, W = x_nchw.shape
    HW = H * W
    OUT = params["w3"].shape[1]
    OUT_PAD = _round_up(max(OUT, 128), 128)           # lane-dense output stores

    # Free view: native NCHW layout, spatial flattened onto the lane axis. No HBM copy.
    x3 = x_nchw.reshape(N, C, HW)

    w3p = jnp.pad(params["w3"], ((0, 0), (0, OUT_PAD - OUT)))
    b3p = jnp.pad(params["b3"], ((0, 0), (0, OUT_PAD - OUT)))

    weight_bytes = sum(
        int(a.size) * a.dtype.itemsize
        for a in (params["w1"], params["b1"], params["w2"], params["b2"], w3p, b3p))

    tile_n, tile_hw, n_hw, vmem_limit = _choose_tiles(
        N, C, HW, x3.dtype.itemsize, weight_bytes)

    if p_int is None:
        p_int = _static_int_exponent(params["p"])

    kernel = _make_cls_head_kernel(HW, tile_hw, n_hw, p_int)

    out = pl.pallas_call(
        kernel,
        out_shape=jax.ShapeDtypeStruct((N, OUT_PAD), jnp.float32),
        grid=(pl.cdiv(N, tile_n), n_hw),
        in_specs=[
            pl.BlockSpec(memory_space=pltpu.SMEM),                      # p (scalar)
            pl.BlockSpec((tile_n, C, tile_hw), lambda i, k: (i, 0, k)),  # pipelined x tile
            pl.BlockSpec(params["w1"].shape, lambda i, k: (0, 0)),       # VMEM-resident
            pl.BlockSpec(params["b1"].shape, lambda i, k: (0, 0)),
            pl.BlockSpec(params["w2"].shape, lambda i, k: (0, 0)),
            pl.BlockSpec(params["b2"].shape, lambda i, k: (0, 0)),
            pl.BlockSpec((C, OUT_PAD), lambda i, k: (0, 0)),
            pl.BlockSpec((1, OUT_PAD), lambda i, k: (0, 0)),
        ],
        out_specs=pl.BlockSpec((tile_n, OUT_PAD), lambda i, k: (i, 0)),
        scratch_shapes=[pltpu.VMEM((tile_n, C), jnp.float32)],           # GeM accumulator
        compiler_params=pltpu.CompilerParams(
            dimension_semantics=("parallel", "arbitrary"),   # batch across TCs; HW serial
            vmem_limit_bytes=vmem_limit,
        ),
    )(params["p"], x3, params["w1"], params["b1"],
      params["w2"], params["b2"], w3p, b3p)

    return out[:N, :OUT]


def init_params(key, in_ch, out_ch, r=8):
    ks = jax.random.split(key, 6)
    mid = in_ch // r
    scale = 0.05
    return {
        # GeM exponent (PyTorch init: p = 3.0)
        "p":  jnp.full((1,), 3.0, jnp.float32),
        # SEBlock linears, stored pre-transposed for `y @ W`
        "w1": scale * jax.random.normal(ks[0], (in_ch, mid), jnp.float32),
        "b1": scale * jax.random.normal(ks[1], (1, mid), jnp.float32),
        "w2": scale * jax.random.normal(ks[2], (mid, in_ch), jnp.float32),
        "b2": scale * jax.random.normal(ks[3], (1, in_ch), jnp.float32),
        # Final classifier Linear(in_ch, out_ch), pre-transposed
        "w3": scale * jax.random.normal(ks[4], (in_ch, out_ch), jnp.float32),
        "b3": scale * jax.random.normal(ks[5], (1, out_ch), jnp.float32),
    }


def cls_head_reference(x_nchw, params):
    """Pure-JAX reference mirroring the PyTorch forward (eval mode)."""
    p = params["p"][0]
    pooled = jnp.mean(jnp.maximum(x_nchw, GEM_EPS) ** p, axis=(2, 3)) ** (1.0 / p)
    h = jax.nn.relu(pooled @ params["w1"] + params["b1"])
    s = jax.nn.sigmoid(h @ params["w2"] + params["b2"])
    se = pooled * s
    return se @ params["w3"] + params["b3"]


if __name__ == "__main__":
    N, C, H, W = 2, 32, 8, 8       # in_ch = 32 (divisible by SE reduction r=8)
    OUT = 4                        # out_ch

    key = jax.random.PRNGKey(0)
    kx, kp = jax.random.split(key)
    x = jax.random.uniform(kx, (N, C, H, W), jnp.float32)   # non-negative activations
    params = init_params(kp, C, OUT)

    # p_int=3 matches the GeM init (p=3.0) and keeps the VPU pow path even under jit.
    out = jax.block_until_ready(cls_head_forward(x, params, p_int=3))
    ref = cls_head_reference(x, params)

    assert out.shape == (N, OUT)
    assert bool(jnp.allclose(out, ref, rtol=1e-4, atol=1e-4)), "mismatch vs JAX reference"
    print("KERNEL_OK")
</pallas_src>

<mosaic_0001>
module attributes {stable_mosaic.version = 11 : i64} {
  func.func @kernel(%arg0: i32, %arg1: i32, %arg2: memref<1xf32, #tpu.memory_space<smem>>, %arg3: memref<2x32x64xf32, #tpu.memory_space<vmem>>, %arg4: memref<32x4xf32, #tpu.memory_space<vmem>>, %arg5: memref<1x4xf32, #tpu.memory_space<vmem>>, %arg6: memref<4x32xf32, #tpu.memory_space<vmem>>, %arg7: memref<1x32xf32, #tpu.memory_space<vmem>>, %arg8: memref<32x128xf32, #tpu.memory_space<vmem>>, %arg9: memref<1x128xf32, #tpu.memory_space<vmem>>, %arg10: memref<2x128xf32, #tpu.memory_space<vmem>>, %arg11: memref<2x32xf32, #tpu.memory_space<vmem>>) attributes {dimension_semantics = [#tpu.dimension_semantics<parallel>, #tpu.dimension_semantics<arbitrary>], iteration_bounds = array<i64: 1, 1>, scalar_prefetch = 0 : i64, scratch_operands = 1 : i64, tpu.core_type = #tpu.core_type<tc>, window_params = [{transform_indices = @transform_0, window_bounds = array<i64: 1>}, {transform_indices = @transform_1, window_bounds = array<i64: 2, 32, 64>}, {pipeline_mode = #tpu.pipeline_mode<synchronous>, transform_indices = @transform_2, window_bounds = array<i64: 32, 4>}, {pipeline_mode = #tpu.pipeline_mode<synchronous>, transform_indices = @transform_3, window_bounds = array<i64: 1, 4>}, {pipeline_mode = #tpu.pipeline_mode<synchronous>, transform_indices = @transform_4, window_bounds = array<i64: 4, 32>}, {pipeline_mode = #tpu.pipeline_mode<synchronous>, transform_indices = @transform_5, window_bounds = array<i64: 1, 32>}, {pipeline_mode = #tpu.pipeline_mode<synchronous>, transform_indices = @transform_6, window_bounds = array<i64: 32, 128>}, {pipeline_mode = #tpu.pipeline_mode<synchronous>, transform_indices = @transform_7, window_bounds = array<i64: 1, 128>}, {transform_indices = @transform_8, window_bounds = array<i64: 2, 128>}]} {
    %c0_i32 = arith.constant 0 : i32
    %0 = arith.cmpi eq, %arg1, %c0_i32 : i32
    %1 = arith.extui %0 : i1 to i32
    %c0_i32_0 = arith.constant 0 : i32
    %2 = arith.cmpi ne, %1, %c0_i32_0 : i32
    scf.if %2 {
      %cst_10 = arith.constant 0.000000e+00 : f32
      %15 = vector.broadcast %cst_10 : f32 to vector<2x32xf32>
      %c0_11 = arith.constant 0 : index
      %c0_12 = arith.constant 0 : index
      %16 = vector.load %arg11[%c0_11, %c0_12] : memref<2x32xf32, #tpu.memory_space<vmem>>, vector<2x32xf32>
      tpu.vector_store %arg11[%c0_11, %c0_12], %15 {strides = array<i32>} : memref<2x32xf32, #tpu.memory_space<vmem>>, vector<2x32xf32>,
    } else {
    }
    %c0 = arith.constant 0 : index
    %c0_1 = arith.constant 0 : index
    %c0_2 = arith.constant 0 : index
    %3 = vector.load %arg3[%c0, %c0_1, %c0_2] : memref<2x32x64xf32, #tpu.memory_space<vmem>>, vector<2x32x64xf32>
    %cst = arith.constant 9.99999997E-7 : f32
    %4 = vector.broadcast %cst : f32 to vector<2x32x64xf32>
    %5 = arith.maximumf %3, %4 : vector<2x32x64xf32>
    %6 = arith.mulf %5, %5 : vector<2x32x64xf32>
    %7 = arith.mulf %5, %6 : vector<2x32x64xf32>
    %c0_3 = arith.constant 0 : index
    %c0_4 = arith.constant 0 : index
    %8 = vector.load %arg11[%c0_3, %c0_4] : memref<2x32xf32, #tpu.memory_space<vmem>>, vector<2x32xf32>
    %cst_5 = arith.constant dense<0.000000e+00> : vector<2x32xf32>
    %9 = vector.multi_reduction <add>, %7, %cst_5 [2] : vector<2x32x64xf32> to vector<2x32xf32>
    %10 = arith.addf %8, %9 : vector<2x32xf32>
    %c0_6 = arith.constant 0 : index
    %c0_7 = arith.constant 0 : index
    %11 = vector.load %arg11[%c0_6, %c0_7] : memref<2x32xf32, #tpu.memory_space<vmem>>, vector<2x32xf32>
    tpu.vector_store %arg11[%c0_6, %c0_7], %10 {strides = array<i32>} : memref<2x32xf32, #tpu.memory_space<vmem>>, vector<2x32xf32>,
    %c0_i32_8 = arith.constant 0 : i32
    %12 = arith.cmpi eq, %arg1, %c0_i32_8 : i32
    %13 = arith.extui %12 : i1 to i32
    %c0_i32_9 = arith.constant 0 : i32
    %14 = arith.cmpi ne, %13, %c0_i32_9 : i32
    scf.if %14 {
      %c0_10 = arith.constant 0 : index
      %15 = memref.load %arg2[%c0_10] : memref<1xf32, #tpu.memory_space<smem>>
      %cst_11 = arith.constant 1.000000e+00 : f32
      %16 = arith.divf %cst_11, %15 : f32
      %c0_12 = arith.constant 0 : index
      %c0_13 = arith.constant 0 : index
      %17 = vector.load %arg11[%c0_12, %c0_13] : memref<2x32xf32, #tpu.memory_space<vmem>>, vector<2x32xf32>
      %18 = math.log %17 : vector<2x32xf32>
      %cst_14 = arith.constant 4.15888309 : f32
      %19 = vector.broadcast %cst_14 : f32 to vector<2x32xf32>
      %20 = arith.subf %18, %19 : vector<2x32xf32>
      %21 = vector.broadcast %16 : f32 to vector<2x32xf32>
      %22 = arith.mulf %21, %20 : vector<2x32xf32>
      %23 = math.exp %22 : vector<2x32xf32>
      %c0_15 = arith.constant 0 : index
      %c0_16 = arith.constant 0 : index
      %24 = vector.load %arg4[%c0_15, %c0_16] : memref<32x4xf32, #tpu.memory_space<vmem>>, vector<32x4xf32>
      %cst_17 = arith.constant dense<0.000000e+00> : vector<2x4xf32>
      %25 = tpu.matmul %23, %24, %cst_17 {dimension_numbers = #tpu.dot_dimension_numbers<[1], [0], [0], [1], [0, 0, 1, 1], [], []>} : vector<2x32xf32>, vector<32x4xf32>, vector<2x4xf32> -> vector<2x4xf32>
      %c0_18 = arith.constant 0 : index
      %c0_19 = arith.constant 0 : index
      %26 = vector.load %arg5[%c0_18, %c0_19] : memref<1x4xf32, #tpu.memory_space<vmem>>, vector<1x4xf32>
      %27 = vector.broadcast %26 : vector<1x4xf32> to vector<2x4xf32>
      %28 = arith.addf %25, %27 : vector<2x4xf32>
      %cst_20 = arith.constant 0.000000e+00 : f32
      %29 = vector.broadcast %cst_20 : f32 to vector<2x4xf32>
      %30 = arith.maximumf %28, %29 : vector<2x4xf32>
      %c0_21 = arith.constant 0 : index
      %c0_22 = arith.constant 0 : index
      %31 = vector.load %arg6[%c0_21, %c0_22] : memref<4x32xf32, #tpu.memory_space<vmem>>, vector<4x32xf32>
      %cst_23 = arith.constant dense<0.000000e+00> : vector<2x32xf32>
      %32 = tpu.matmul %30, %31, %cst_23 {dimension_numbers = #tpu.dot_dimension_numbers<[1], [0], [0], [1], [0, 0, 1, 1], [], []>} : vector<2x4xf32>, vector<4x32xf32>, vector<2x32xf32> -> vector<2x32xf32>
      %c0_24 = arith.constant 0 : index
      %c0_25 = arith.constant 0 : index
      %33 = vector.load %arg7[%c0_24, %c0_25] : memref<1x32xf32, #tpu.memory_space<vmem>>, vector<1x32xf32>
      %34 = vector.broadcast %33 : vector<1x32xf32> to vector<2x32xf32>
      %35 = arith.addf %32, %34 : vector<2x32xf32>
      %36 = arith.negf %35 : vector<2x32xf32>
      %37 = math.exp %36 : vector<2x32xf32>
      %cst_26 = arith.constant 1.000000e+00 : f32
      %38 = vector.broadcast %cst_26 : f32 to vector<2x32xf32>
      %39 = arith.addf %38, %37 : vector<2x32xf32>
      %40 = arith.divf %38, %39 : vector<2x32xf32>
      %41 = arith.mulf %23, %40 : vector<2x32xf32>
      %c0_27 = arith.constant 0 : index
      %c0_28 = arith.constant 0 : index
      %42 = vector.load %arg8[%c0_27, %c0_28] : memref<32x128xf32, #tpu.memory_space<vmem>>, vector<32x128xf32>
      %cst_29 = arith.constant dense<0.000000e+00> : vector<2x128xf32>
      %43 = tpu.matmul %41, %42, %cst_29 {dimension_numbers = #tpu.dot_dimension_numbers<[1], [0], [0], [1], [0, 0, 1, 1], [], []>} : vector<2x32xf32>, vector<32x128xf32>, vector<2x128xf32> -> vector<2x128xf32>
      %c0_30 = arith.constant 0 : index
      %c0_31 = arith.constant 0 : index
      %44 = vector.load %arg9[%c0_30, %c0_31] : memref<1x128xf32, #tpu.memory_space<vmem>>, vector<1x128xf32>
      %45 = vector.broadcast %44 : vector<1x128xf32> to vector<2x128xf32>
      %46 = arith.addf %43, %45 : vector<2x128xf32>
      %c0_32 = arith.constant 0 : index
      %c0_33 = arith.constant 0 : index
      %47 = vector.load %arg10[%c0_32, %c0_33] : memref<2x128xf32, #tpu.memory_space<vmem>>, vector<2x128xf32>
      tpu.vector_store %arg10[%c0_32, %c0_33], %46 {strides = array<i32>} : memref<2x128xf32, #tpu.memory_space<vmem>>, vector<2x128xf32>,
    } else {
    }
    return
  }
  func.func @transform_0(%arg0: i32, %arg1: i32) -> i32 {
    %c0_i32 = arith.constant 0 : i32
    %c0_i32_0 = arith.constant 0 : i32
    return %c0_i32 : i32
  }
  func.func @transform_1(%arg0: i32, %arg1: i32) -> (i32, i32, i32) {
    %c0_i32 = arith.constant 0 : i32
    %c0_i32_0 = arith.constant 0 : i32
    return %arg0, %c0_i32, %arg1 : i32, i32, i32
  }
  func.func @transform_2(%arg0: i32, %arg1: i32) -> (i32, i32) {
    %c0_i32 = arith.constant 0 : i32
    %c0_i32_0 = arith.constant 0 : i32
    %c0_i32_1 = arith.constant 0 : i32
    return %c0_i32, %c0_i32_0 : i32, i32
  }
  func.func @transform_3(%arg0: i32, %arg1: i32) -> (i32, i32) {
    %c0_i32 = arith.constant 0 : i32
    %c0_i32_0 = arith.constant 0 : i32
    %c0_i32_1 = arith.constant 0 : i32
    return %c0_i32, %c0_i32_0 : i32, i32
  }
  func.func @transform_4(%arg0: i32, %arg1: i32) -> (i32, i32) {
    %c0_i32 = arith.constant 0 : i32
    %c0_i32_0 = arith.constant 0 : i32
    %c0_i32_1 = arith.constant 0 : i32
    return %c0_i32, %c0_i32_0 : i32, i32
  }
  func.func @transform_5(%arg0: i32, %arg1: i32) -> (i32, i32) {
    %c0_i32 = arith.constant 0 : i32
    %c0_i32_0 = arith.constant 0 : i32
    %c0_i32_1 = arith.constant 0 : i32
    return %c0_i32, %c0_i32_0 : i32, i32
  }
  func.func @transform_6(%arg0: i32, %arg1: i32) -> (i32, i32) {
    %c0_i32 = arith.constant 0 : i32
    %c0_i32_0 = arith.constant 0 : i32
    %c0_i32_1 = arith.constant 0 : i32
    return %c0_i32, %c0_i32_0 : i32, i32
  }
  func.func @transform_7(%arg0: i32, %arg1: i32) -> (i32, i32) {
    %c0_i32 = arith.constant 0 : i32
    %c0_i32_0 = arith.constant 0 : i32
    %c0_i32_1 = arith.constant 0 : i32
    return %c0_i32, %c0_i32_0 : i32, i32
  }
  func.func @transform_8(%arg0: i32, %arg1: i32) -> (i32, i32) {
    %c0_i32 = arith.constant 0 : i32
    %c0_i32_0 = arith.constant 0 : i32
    return %arg0, %c0_i32 : i32, i32
  }
}

</mosaic_0001>

<llo_original>
// kernel: tpu_custom_call.1
$region0: #{tpu_custom_call.1}
  #allocation0 [shape = 'u32[]', space=smem, size = 0x4, offset = 0x4, fixed_abs, tag = 'smem constant byte address 0x4 - core index']
  #allocation1 [shape = 'u32[144,128]{1,0:T(1,128)}', space=vmem, size = 0x12000, scoped, tag = 'internal scratch']
  #allocation2 [shape = 'f32[2,32]{1,0:T(2,128)}', space=vmem, size = 0x400, scoped, tag = 'scratch operand']
  #allocation3 [shape = 'f32[1]{0:T(128)S(6)}', space=smem, size = 0x200, scoped, tag = 'scoped memory for tpu_custom_call.1']
  %s0 = inlined_call_operand.<no memory space> [shape: f32[1], index: 0, kind: input, shape index: {}]
  %s1 = inlined_call_operand.hbm [shape: f32[2,32,64], index: 1, kind: input, shape index: {}]
  %s2 = inlined_call_operand.vmem [shape: f32[32,4], index: 2, kind: input, shape index: {}]
  %s3 = inlined_call_operand.vmem [shape: f32[1,4], index: 3, kind: input, shape index: {}]
  %s4 = inlined_call_operand.vmem [shape: f32[4,32], index: 4, kind: input, shape index: {}]
  %s5 = inlined_call_operand.vmem [shape: f32[1,32], index: 5, kind: input, shape index: {}]
  %s6 = inlined_call_operand.vmem [shape: f32[32,128], index: 6, kind: input, shape index: {}]
  %s7 = inlined_call_operand.vmem [shape: f32[1,128], index: 7, kind: input, shape index: {}]
  %s8 = inlined_call_operand.hbm [shape: f32[2,128], index: 8, kind: output, shape index: {}]
  %s9 = sld [smem:[#allocation0]]
  $region54: #{tpu_custom_call.1} parent=0
    _
  %s11 = ssub.s32 1, %s9
  %s12 = scalar_select 0, %s11, %s9
  %13 = sst [smem:[#allocation3]] %s0
  $region1: #{tpu_custom_call.1} parent=0
    #allocation4 [shape = 'u8[32768]{0}', space=vmem, size = 0x8000, scoped, tag = 'input window, operand 1, single buffered']
    #allocation5 [shape = 's32[1]{0}', space=sflag, size = 0x4, scoped, tag = 'scoped memory for tpu_custom_call.1']
    #allocation6 [shape = 's32[1]{0}', space=sflag, size = 0x4, scoped, tag = 'scoped memory for tpu_custom_call.1']
    #allocation7 [shape = 'u8[1024]{0}', space=vmem, size = 0x400, scoped, tag = 'output window, operand 0, single buffered']
    %14 = vsyncpa [#allocation5], 0
    %15 = vsyncpa [#allocation6], 0
    // Predicated region
    $region2: #{tpu_custom_call.1} parent=1 // pred_check
      _
    $region3: #{tpu_custom_call.1} parent=1 // pred_check_branch
      %17 = sbr.rel (0) target = $region5
    $region4: #{tpu_custom_call.1} parent=1 // pred_region
      _
    $region5: #{tpu_custom_call.1} parent=1 // pred_fallthru
      _
    // Predicated region
    $region6: #{tpu_custom_call.1} parent=1 // pred_check
      _
    $region7: #{tpu_custom_call.1} parent=1 // pred_check_branch
      %19 = sbr.rel (0) target = $region9
    $region8: #{tpu_custom_call.1} parent=1 // pred_region
      %s21 = ssub.s32 1024, 1024
      %22 = vsyncadd [#allocation5], %s21
      %s23 = sshll.u32 [#allocation4], 4
      %s24 = int_to_ptr.vmem [resolvable:$true] %s23
      %29 = dma.hbm_to_vmem [thread:$0]  %s1, 1024, %s24, [#allocation5], 128, 128, 8
    $region9: #{tpu_custom_call.1} parent=1 // pred_fallthru
      _
    // Predicated region
    $region10: #{tpu_custom_call.1} parent=1 // pred_check
      _
    $region11: #{tpu_custom_call.1} parent=1 // pred_check_branch
      %31 = sbr.rel (0) target = $region13
    $region12: #{tpu_custom_call.1} parent=1 // pred_region
      _
    $region13: #{tpu_custom_call.1} parent=1 // pred_fallthru
      _
    // Predicated region
    $region14: #{tpu_custom_call.1} parent=1 // pred_check
      _
    $region15: #{tpu_custom_call.1} parent=1 // pred_check_branch
      %33 = sbr.rel (0) target = $region17
    $region16: #{tpu_custom_call.1} parent=1 // pred_region
      _
    $region17: #{tpu_custom_call.1} parent=1 // pred_fallthru
      _
    // Predicated region
    $region18: #{tpu_custom_call.1} parent=1 // pred_check
      _
    $region19: #{tpu_custom_call.1} parent=1 // pred_check_branch
      %35 = sbr.rel (0) target = $region21
    $region20: #{tpu_custom_call.1} parent=1 // pred_region
      _
    $region21: #{tpu_custom_call.1} parent=1 // pred_fallthru
      _
    // Predicated region
    $region22: #{tpu_custom_call.1} parent=1 // pred_check
      _
    $region23: #{tpu_custom_call.1} parent=1 // pred_check_branch
      %37 = sbr.rel (0) target = $region25
    $region24: #{tpu_custom_call.1} parent=1 // pred_region
      _
    $region25: #{tpu_custom_call.1} parent=1 // pred_fallthru
      _
    // Predicated region
    $region26: #{tpu_custom_call.1} parent=1 // pred_check
      _
    $region27: #{tpu_custom_call.1} parent=1 // pred_check_branch
      %39 = sbr.rel (0) target = $region29
    $region28: #{tpu_custom_call.1} parent=1 // pred_region
      _
    $region29: #{tpu_custom_call.1} parent=1 // pred_fallthru
      _
    // Predicated region
    $region30: #{tpu_custom_call.1} parent=1 // pred_check
      _
    $region31: #{tpu_custom_call.1} parent=1 // pred_check_branch
      %41 = sbr.rel (0) target = $region33
    $region32: #{tpu_custom_call.1} parent=1 // pred_region
      _
    $region33: #{tpu_custom_call.1} parent=1 // pred_fallthru
      _
    // Predicated region
    $region34: #{tpu_custom_call.1} parent=1 // pred_check
      _
    $region35: #{tpu_custom_call.1} parent=1 // pred_check_branch
      %43 = sbr.rel (0) target = $region37
    $region36: #{tpu_custom_call.1} parent=1 // pred_region
      %44 = dma.done [#allocation5], 1024
    $region37: #{tpu_custom_call.1} parent=1 // pred_fallthru
      _
    %p45 = scmp.eq.s32.totalorder 0, 0
    // Predicated region
    $region38: #{tpu_custom_call.1} parent=1 // pred_check
      %p46 = pneg %p45
    $region39: #{tpu_custom_call.1} parent=1 // pred_check_branch
      %48 = sbr.rel (%p46) target = $region41
    $region40: #{tpu_custom_call.1} parent=1 // pred_region
      %vm49 = vcmask 254976
      %50 = vst.msk [vmem:[#allocation2] sm:$0x3] %vm49, 0.0
    $region41: #{tpu_custom_call.1} parent=1 // pred_fallthru
      _
    %v51 = vld [vmem:[#allocation4] sm:$0xff]
    %v52 = vld [vmem:[#allocation4 + $0x8] sm:$0xff]
    %v53 = vld [vmem:[#allocation4 + $0x10] sm:$0xff]
    %v54 = vld [vmem:[#allocation4 + $0x18] sm:$0xff]
    %v55 = vld [vmem:[#allocation4 + $0x20] sm:$0xff]
    %v56 = vld [vmem:[#allocation4 + $0x28] sm:$0xff]
    %v57 = vld [vmem:[#allocation4 + $0x30] sm:$0xff]
    %v58 = vld [vmem:[#allocation4 + $0x38] sm:$0xff]
    %v59 = vmax.f32 %v51, 1e-06
    %v60 = vmax.f32 %v52, 1e-06
    %v61 = vmax.f32 %v53, 1e-06
    %v62 = vmax.f32 %v54, 1e-06
    %v63 = vmax.f32 %v55, 1e-06
    %v64 = vmax.f32 %v56, 1e-06
    %v65 = vmax.f32 %v57, 1e-06
    %v66 = vmax.f32 %v58, 1e-06
    %v67 = vmul.f32 %v59, %v59
    %v68 = vmul.f32 %v60, %v60
    %v69 = vmul.f32 %v61, %v61
    %v70 = vmul.f32 %v62, %v62
    %v71 = vmul.f32 %v63, %v63
    %v72 = vmul.f32 %v64, %v64
    %v73 = vmul.f32 %v65, %v65
    %v74 = vmul.f32 %v66, %v66
    %v75 = vmul.f32 %v59, %v67
    %v76 = vmul.f32 %v60, %v68
    %v77 = vmul.f32 %v61, %v69
    %v78 = vmul.f32 %v62, %v70
    %v79 = vmul.f32 %v63, %v71
    %v80 = vmul.f32 %v64, %v72
    %v81 = vmul.f32 %v65, %v73
    %v82 = vmul.f32 %v66, %v74
    %v83 = vld [vmem:[#allocation2] sm:$0x3]
    %vm84 = vcmask 523264
    %v85 = vsel %vm84, %v75, 0.0
    %86 = vadd.xlane.f32.xlu0 %v85
    %v87 = vpop.xlane.xlu0 %86
    %v88 = vsel %vm84, %v76, 0.0
    %89 = vadd.xlane.f32.xlu0 %v88
    %v90 = vpop.xlane.xlu0 %89
    %v91 = vsel %vm84, %v77, 0.0
    %92 = vadd.xlane.f32.xlu0 %v91
    %v93 = vpop.xlane.xlu0 %92
    %v94 = vsel %vm84, %v78, 0.0
    %95 = vadd.xlane.f32.xlu0 %v94
    %v96 = vpop.xlane.xlu0 %95
    %v97 = vsel %vm84, %v79, 0.0
    %98 = vadd.xlane.f32.xlu0 %v97
    %v99 = vpop.xlane.xlu0 %98
    %v100 = vsel %vm84, %v80, 0.0
    %101 = vadd.xlane.f32.xlu0 %v100
    %v102 = vpop.xlane.xlu0 %101
    %v103 = vsel %vm84, %v81, 0.0
    %104 = vadd.xlane.f32.xlu0 %v103
    %v105 = vpop.xlane.xlu0 %104
    %v106 = vsel %vm84, %v82, 0.0
    %107 = vadd.xlane.f32.xlu0 %v106
    %v108 = vpop.xlane.xlu0 %107
    %v117 = vlaneseq
    %v118 = vand.u32 %v117, 127
    %v119 = vlaneseq
    %v120 = vshrl.u32 %v119, 7
    %v121 = vsub.s32 %v118, %v120
    %v122 = vrot.slane %v87, %v121
    %v123 = vadd.s32 %v118, 4294967288
    %v124 = vlaneseq
    %v125 = vshrl.u32 %v124, 7
    %v126 = vsub.s32 %v123, %v125
    %v127 = vrot.slane %v90, %v126
    %vm128 = vcmask 130112
    %v129 = vsel %vm128, %v127, %v122
    %v130 = vadd.s32 %v118, 4294967280
    %v131 = vlaneseq
    %v132 = vshrl.u32 %v131, 7
    %v133 = vsub.s32 %v130, %v132
    %v134 = vrot.slane %v93, %v133
    %vm135 = vcmask 195712
    %v136 = vsel %vm135, %v134, %v129
    %v137 = vadd.s32 %v118, 4294967272
    %v138 = vlaneseq
    %v139 = vshrl.u32 %v138, 7
    %v140 = vsub.s32 %v137, %v139
    %v141 = vrot.slane %v96, %v140
    %vm142 = vcmask 261312
    %v143 = vsel %vm142, %v141, %v136
    %v144 = vlaneseq
    %v145 = vshrl.u32 %v144, 7
    %v146 = vsub.s32 %v118, %v145
    %v147 = vrot.slane %v99, %v146
    %v148 = vlaneseq
    %v149 = vshrl.u32 %v148, 7
    %v150 = vsub.s32 %v123, %v149
    %v151 = vrot.slane %v102, %v150
    %v152 = vsel %vm128, %v151, %v147
    %v153 = vlaneseq
    %v154 = vshrl.u32 %v153, 7
    %v155 = vsub.s32 %v130, %v154
    %v156 = vrot.slane %v105, %v155
    %v157 = vsel %vm135, %v156, %v152
    %v158 = vlaneseq
    %v159 = vshrl.u32 %v158, 7
    %v160 = vsub.s32 %v137, %v159
    %v161 = vrot.slane %v108, %v160
    %v162 = vsel %vm142, %v161, %v157
    %vm163 = vcmask 1041409
    %v164 = vsel %vm163, %v162, %v143
    %v166 = vadd.f32 %v83, %v164
    %vm167 = vcmask 254976
    %168 = vst.msk [vmem:[#allocation2] sm:$0x3] %vm167, %v166
    // Predicated region
    $region42: #{tpu_custom_call.1} parent=1 // pred_check
      %p169 = pneg %p45
    $region43: #{tpu_custom_call.1} parent=1 // pred_check_branch
      %171 = sbr.rel (%p169) target = $region45
    $region44: #{tpu_custom_call.1} parent=1 // pred_region
      %s172 = sld [smem:[#allocation3]]
      %v173 = vstv %s172
      %v174 = vrcp.pop %v173
      %s175 = vtos %v174
      %v176 = vld [vmem:[#allocation2] sm:$0x3]
      %v177 = vlog2.pop %v176
      %v178 = vmul.f32 %v177, 0.6931472
      %v179 = vsub.f32 %v178, 4.158883
      %v180 = vstv %s175
      %v181 = vmul.f32 %v180, %v179
      %v182 = vmul.f32 %v181, 1.442695
      %v183 = vpow.pop %v182
      %v184 = vld [vmem:[%s2] sm:$0xff]
      %v185 = vld [vmem:[%s2 + $0x8] sm:$0xff]
      %v186 = vld [vmem:[%s2 + $0x10] sm:$0xff]
      %v187 = vld [vmem:[%s2 + $0x18] sm:$0xff]
      %v188 = vld [vmem:[%s3] sm:$0x1]
      %v190 = vlaneseq
      %v191 = vshrl.u32 %v190, 7
      %v192 = vsub.s32 0, %v191
      %v193 = vrot.slane %v188, %v192
      %vm195 = vcmask 261120
      %v197 = vsel %vm195, %v183, 0
      %199 = vmatprep.subr.mxu0 0.0
      %200 = vmatpush1.msra.mxu0 0.0
      %201 = vmatprep.subr.mxu0 0.0
      %202 = vmatpush1.msra.mxu0 0.0
      %203 = vmatprep.subr.mxu0 0.0
      %204 = vmatpush1.msra.mxu0 0.0
      %205 = vmatprep.subr.mxu0 0.0
      %206 = vmatpush1.msra.mxu0 0.0
      %207 = vmatprep.subr.mxu0 0.0
      %208 = vmatpush1.msra.mxu0 0.0
      %209 = vmatprep.subr.mxu0 0.0
      %210 = vmatpush1.msra.mxu0 0.0
      %211 = vmatprep.subr.mxu0 0.0
      %212 = vmatpush1.msra.mxu0 0.0
      %213 = vmatprep.subr.mxu0 0.0
      %214 = vmatpush1.msra.mxu0 0.0
      %215 = vmatprep.subr.mxu0 0.0
      %216 = vmatpush1.msra.mxu0 0.0
      %217 = vmatprep.subr.mxu0 0.0
      %218 = vmatpush1.msra.mxu0 0.0
      %219 = vmatprep.subr.mxu0 0.0
      %220 = vmatpush1.msra.mxu0 0.0
      %221 = vmatprep.subr.mxu0 0.0
      %222 = vmatpush1.msra.mxu0 0.0
      %223 = vmatprep.subr.mxu0 0.0
      %224 = vmatpush1.msra.mxu0 %v187
      %225 = vmatprep.subr.mxu0 0.0
      %226 = vmatpush1.msra.mxu0 %v186
      %227 = vmatprep.subr.mxu0 0.0
      %228 = vmatpush1.msra.mxu0 %v185
      %229 = vmatprep.subr.mxu0 0.0
      %230 = vmatpush1.msra.mxu0 %v184
      %231 = vmatprep.subr.mxu0 0.0
      %232 = vmatpush2.msra.mxu0 0.0
      %233 = vmatprep.subr.mxu0 0.0
      %234 = vmatpush2.msra.mxu0 0.0
      %235 = vmatprep.subr.mxu0 0.0
      %236 = vmatpush2.msra.mxu0 0.0
      %237 = vmatprep.subr.mxu0 0.0
      %238 = vmatpush2.msra.mxu0 0.0
      %239 = vmatprep.subr.mxu0 0.0
      %240 = vmatpush2.msra.mxu0 0.0
      %241 = vmatprep.subr.mxu0 0.0
      %242 = vmatpush2.msra.mxu0 0.0
      %243 = vmatprep.subr.mxu0 0.0
      %244 = vmatpush2.msra.mxu0 0.0
      %245 = vmatprep.subr.mxu0 0.0
      %246 = vmatpush2.msra.mxu0 0.0
      %247 = vmatprep.subr.mxu0 0.0
      %248 = vmatpush2.msra.mxu0 0.0
      %249 = vmatprep.subr.mxu0 0.0
      %250 = vmatpush2.msra.mxu0 0.0
      %251 = vmatprep.subr.mxu0 0.0
      %252 = vmatpush2.msra.mxu0 0.0
      %253 = vmatprep.subr.mxu0 0.0
      %254 = vmatpush2.msra.mxu0 0.0
      %255 = vmatprep.subr.mxu0 0.0
      %256 = vmatpush2.msra.mxu0 0.0
      %257 = vmatprep.subr.mxu0 0.0
      %258 = vmatpush2.msra.mxu0 0.0
      %259 = vmatprep.subr.mxu0 0.0
      %260 = vmatpush2.msra.mxu0 0.0
      %261 = vmatprep.subr.mxu0 0.0
      %262 = vmatpush2.msra.mxu0 0.0
      %263 = vmatprep.mubr.f32.mxu0 0.0
      %264 = vmatmul.mubr.f32.gmra.mxu0 %v197
      %v265 = vpop.f32.mrf.mxu0
      %v266 = vadd.f32 %v193, %v265
      %v267 = vpop.f32.mrf.mxu0
      %268 = vdwg.mxu0
      %v269 = vmax.f32 %v266, 0.0
      %v270 = vld [vmem:[%s4] sm:$0xf]
      %v271 = vld [vmem:[%s5] sm:$0x1]
      %v273 = vlaneseq
      %v274 = vshrl.u32 %v273, 7
      %v275 = vsub.s32 0, %v274
      %v276 = vrot.slane %v271, %v275
      %vm278 = vcmask 31744
      %v280 = vsel %vm278, %v269, 0
      %vm282 = vcmask 1043456
      %v284 = vsel %vm282, %v270, 0
      %286 = vmatprep.subr.mxu0 0.0
      %287 = vmatpush1.msra.mxu0 0.0
      %288 = vmatprep.subr.mxu0 0.0
      %289 = vmatpush1.msra.mxu0 0.0
      %290 = vmatprep.subr.mxu0 0.0
      %291 = vmatpush1.msra.mxu0 0.0
      %292 = vmatprep.subr.mxu0 0.0
      %293 = vmatpush1.msra.mxu0 0.0
      %294 = vmatprep.subr.mxu0 0.0
      %295 = vmatpush1.msra.mxu0 0.0
      %296 = vmatprep.subr.mxu0 0.0
      %297 = vmatpush1.msra.mxu0 0.0
      %298 = vmatprep.subr.mxu0 0.0
      %299 = vmatpush1.msra.mxu0 0.0
      %300 = vmatprep.subr.mxu0 0.0
      %301 = vmatpush1.msra.mxu0 0.0
      %302 = vmatprep.subr.mxu0 0.0
      %303 = vmatpush1.msra.mxu0 0.0
      %304 = vmatprep.subr.mxu0 0.0
      %305 = vmatpush1.msra.mxu0 0.0
      %306 = vmatprep.subr.mxu0 0.0
      %307 = vmatpush1.msra.mxu0 0.0
      %308 = vmatprep.subr.mxu0 0.0
      %309 = vmatpush1.msra.mxu0 0.0
      %310 = vmatprep.subr.mxu0 0.0
      %311 = vmatpush1.msra.mxu0 0.0
      %312 = vmatprep.subr.mxu0 0.0
      %313 = vmatpush1.msra.mxu0 0.0
      %314 = vmatprep.subr.mxu0 0.0
      %315 = vmatpush1.msra.mxu0 0.0
      %316 = vmatprep.subr.mxu0 0.0
      %317 = vmatpush1.msra.mxu0 %v284
      %318 = vmatprep.subr.mxu0 0.0
      %319 = vmatpush2.msra.mxu0 0.0
      %320 = vmatprep.subr.mxu0 0.0
      %321 = vmatpush2.msra.mxu0 0.0
      %322 = vmatprep.subr.mxu0 0.0
      %323 = vmatpush2.msra.mxu0 0.0
      %324 = vmatprep.subr.mxu0 0.0
      %325 = vmatpush2.msra.mxu0 0.0
      %326 = vmatprep.subr.mxu0 0.0
      %327 = vmatpush2.msra.mxu0 0.0
      %328 = vmatprep.subr.mxu0 0.0
      %329 = vmatpush2.msra.mxu0 0.0
      %330 = vmatprep.subr.mxu0 0.0
      %331 = vmatpush2.msra.mxu0 0.0
      %332 = vmatprep.subr.mxu0 0.0
      %333 = vmatpush2.msra.mxu0 0.0
      %334 = vmatprep.subr.mxu0 0.0
      %335 = vmatpush2.msra.mxu0 0.0
      %336 = vmatprep.subr.mxu0 0.0
      %337 = vmatpush2.msra.mxu0 0.0
      %338 = vmatprep.subr.mxu0 0.0
      %339 = vmatpush2.msra.mxu0 0.0
      %340 = vmatprep.subr.mxu0 0.0
      %341 = vmatpush2.msra.mxu0 0.0
      %342 = vmatprep.subr.mxu0 0.0
      %343 = vmatpush2.msra.mxu0 0.0
      %344 = vmatprep.subr.mxu0 0.0
      %345 = vmatpush2.msra.mxu0 0.0
      %346 = vmatprep.subr.mxu0 0.0
      %347 = vmatpush2.msra.mxu0 0.0
      %348 = vmatprep.subr.mxu0 0.0
      %349 = vmatpush2.msra.mxu0 0.0
      %350 = vmatprep.mubr.f32.mxu0 0.0
      %351 = vmatmul.mubr.f32.gmra.mxu0 %v280
      %v352 = vpop.f32.mrf.mxu0
      %v353 = vadd.f32 %v276, %v352
      %v354 = vpop.f32.mrf.mxu0
      %355 = vdwg.mxu0
      %v356 = vxor.u32 %v353, 2147483648
      %v357 = vmul.f32 %v356, 1.442695
      %v358 = vpow.pop %v357
      %v359 = vadd.f32 %v358, 1.0
      %v360 = vrcp.pop %v359
      %v361 = vmul.f32 1.0, %v360
      %v362 = vmul.f32 %v183, %v361
      %v363 = vld [vmem:[%s6] sm:$0xff]
      %v364 = vld [vmem:[%s6 + $0x8] sm:$0xff]
      %v365 = vld [vmem:[%s6 + $0x10] sm:$0xff]
      %v366 = vld [vmem:[%s6 + $0x18] sm:$0xff]
      %v367 = vld [vmem:[%s7] sm:$0x1]
      %v369 = vlaneseq
      %v370 = vshrl.u32 %v369, 7
      %v371 = vsub.s32 0, %v370
      %v372 = vrot.slane %v367, %v371
      %v375 = vsel %vm195, %v362, 0
      %377 = vmatprep.subr.mxu0 0.0
      %378 = vmatpush1.msra.mxu0 0.0
      %379 = vmatprep.subr.mxu0 0.0
      %380 = vmatpush1.msra.mxu0 0.0
      %381 = vmatprep.subr.mxu0 0.0
      %382 = vmatpush1.msra.mxu0 0.0
      %383 = vmatprep.subr.mxu0 0.0
      %384 = vmatpush1.msra.mxu0 0.0
      %385 = vmatprep.subr.mxu0 0.0
      %386 = vmatpush1.msra.mxu0 0.0
      %387 = vmatprep.subr.mxu0 0.0
      %388 = vmatpush1.msra.mxu0 0.0
      %389 = vmatprep.subr.mxu0 0.0
      %390 = vmatpush1.msra.mxu0 0.0
      %391 = vmatprep.subr.mxu0 0.0
      %392 = vmatpush1.msra.mxu0 0.0
      %393 = vmatprep.subr.mxu0 0.0
      %394 = vmatpush1.msra.mxu0 0.0
      %395 = vmatprep.subr.mxu0 0.0
      %396 = vmatpush1.msra.mxu0 0.0
      %397 = vmatprep.subr.mxu0 0.0
      %398 = vmatpush1.msra.mxu0 0.0
      %399 = vmatprep.subr.mxu0 0.0
      %400 = vmatpush1.msra.mxu0 0.0
      %401 = vmatprep.subr.mxu0 0.0
      %402 = vmatpush1.msra.mxu0 %v366
      %403 = vmatprep.subr.mxu0 0.0
      %404 = vmatpush1.msra.mxu0 %v365
      %405 = vmatprep.subr.mxu0 0.0
      %406 = vmatpush1.msra.mxu0 %v364
      %407 = vmatprep.subr.mxu0 0.0
      %408 = vmatpush1.msra.mxu0 %v363
      %409 = vmatprep.subr.mxu0 0.0
      %410 = vmatpush2.msra.mxu0 0.0
      %411 = vmatprep.subr.mxu0 0.0
      %412 = vmatpush2.msra.mxu0 0.0
      %413 = vmatprep.subr.mxu0 0.0
      %414 = vmatpush2.msra.mxu0 0.0
      %415 = vmatprep.subr.mxu0 0.0
      %416 = vmatpush2.msra.mxu0 0.0
      %417 = vmatprep.subr.mxu0 0.0
      %418 = vmatpush2.msra.mxu0 0.0
      %419 = vmatprep.subr.mxu0 0.0
      %420 = vmatpush2.msra.mxu0 0.0
      %421 = vmatprep.subr.mxu0 0.0
      %422 = vmatpush2.msra.mxu0 0.0
      %423 = vmatprep.subr.mxu0 0.0
      %424 = vmatpush2.msra.mxu0 0.0
      %425 = vmatprep.subr.mxu0 0.0
      %426 = vmatpush2.msra.mxu0 0.0
      %427 = vmatprep.subr.mxu0 0.0
      %428 = vmatpush2.msra.mxu0 0.0
      %429 = vmatprep.subr.mxu0 0.0
      %430 = vmatpush2.msra.mxu0 0.0
      %431 = vmatprep.subr.mxu0 0.0
      %432 = vmatpush2.msra.mxu0 0.0
      %433 = vmatprep.subr.mxu0 0.0
      %434 = vmatpush2.msra.mxu0 0.0
      %435 = vmatprep.subr.mxu0 0.0
      %436 = vmatpush2.msra.mxu0 0.0
      %437 = vmatprep.subr.mxu0 0.0
      %438 = vmatpush2.msra.mxu0 0.0
      %439 = vmatprep.subr.mxu0 0.0
      %440 = vmatpush2.msra.mxu0 0.0
      %441 = vmatprep.mubr.f32.mxu0 0.0
      %442 = vmatmul.mubr.f32.gmra.mxu0 %v375
      %v443 = vpop.f32.mrf.mxu0
      %v444 = vadd.f32 %v372, %v443
      %v445 = vpop.f32.mrf.mxu0
      %446 = vdwg.mxu0
      %447 = vst [vmem:[#allocation7] sm:$0x3] %v444
    $region45: #{tpu_custom_call.1} parent=1 // pred_fallthru
      _
    // Predicated region
    $region46: #{tpu_custom_call.1} parent=1 // pred_check
      _
    $region47: #{tpu_custom_call.1} parent=1 // pred_check_branch
      %449 = sbr.rel (0) target = $region49
    $region48: #{tpu_custom_call.1} parent=1 // pred_region
      %s451 = ssub.s32 32, 32
      %452 = vsyncadd [#allocation6], %s451
      %s454 = sshll.u32 [#allocation7], 4
      %s455 = int_to_ptr.vmem [resolvable:$true] %s454
      %457 = dma.vmem_to_hbm [thread:$0]  %s455, 32, %s8, [#allocation6]
    $region49: #{tpu_custom_call.1} parent=1 // pred_fallthru
      _
    // Predicated region
    $region50: #{tpu_custom_call.1} parent=1 // pred_check
      _
    $region51: #{tpu_custom_call.1} parent=1 // pred_check_branch
      %459 = sbr.rel (0) target = $region53
    $region52: #{tpu_custom_call.1} parent=1 // pred_region
      %460 = dma.done [#allocation6], 32
    $region53: #{tpu_custom_call.1} parent=1 // pred_fallthru
      _
    %461 = vsyncpa [#allocation5], 1
    %462 = vsyncpa [#allocation6], 1

</llo_original>
